<compile_context>
chip_gen: v7x
topology: tpu7x:2x2x1
jax: 0.10.0
libtpu: 0.0.40
codegen_flags: <defaults>
</compile_context>

<pallas_src>
import functools

import jax
import jax.numpy as jnp
from jax import lax
from jax.experimental import pallas as pl
from jax.experimental.pallas import tpu as pltpu


# --------------------- kernel 1: LayerNorm_1 + QKV proj ---------------------
def _ln_qkv_kernel(n_head,
                   x_ref,                      # (1, TQ, C)
                   g1_ref, b1_ref,             # (1, C)
                   wqkv_ref, bqkv_ref,         # (C, 3C) bf16, (1, 3C) f32
                   q_ref, k_ref, v_ref):       # (1, H, TQ, hd) bf16 each
    x = x_ref[0].astype(jnp.float32)           # (TQ, C)
    TQ, C = x.shape
    hd = C // n_head
    eps = 1e-5

    mu = jnp.mean(x, axis=-1, keepdims=True)
    var = jnp.mean((x - mu) ** 2, axis=-1, keepdims=True)
    xn = (x - mu) * lax.rsqrt(var + eps) * g1_ref[...] + b1_ref[...]

    qkv = jnp.dot(xn.astype(jnp.bfloat16), wqkv_ref[...],
                  preferred_element_type=jnp.float32) + bqkv_ref[...]

    scale = 1.0 / (hd ** 0.5)

    # Head split done with one reshape + one transpose per tensor (no per-head
    # 64-lane column extracts / per-head masked stores); outputs head-major.
    def split_heads(z):                        # (TQ, C) f32 -> (H, TQ, hd)
        return jnp.transpose(z.reshape(TQ, n_head, hd), (1, 0, 2))

    q_ref[0] = split_heads(qkv[:, 0 * C:1 * C] * scale).astype(q_ref.dtype)
    k_ref[0] = split_heads(qkv[:, 1 * C:2 * C]).astype(k_ref.dtype)
    v_ref[0] = split_heads(qkv[:, 2 * C:3 * C]).astype(v_ref.dtype)


# ------ kernel 2: flash attention + c_proj + residual + LN2 + MLP + res ------
def _attn_mlp_kernel(n_head,
                     x_ref,                    # (1, TQ, C) residual input
                     q_ref, k_ref, v_ref,      # (1, H, TQ/TK, hd) bf16
                     wpr_ref, bpr_ref,         # (C, C) bf16, (1, C)
                     g2_ref, b2_ref,           # (1, C)
                     wfc_ref, bfc_ref,         # (C, 4C) bf16, (1, 4C)
                     wp2_ref, bp2_ref,         # (4C, C) bf16, (1, C)
                     o_ref,                    # (1, TQ, C)
                     m_ref, l_ref, acc_ref):   # (H,TQ,128),(H,TQ,128),(H,TQ,hd)
    H = n_head
    TQ = q_ref.shape[2]
    TK = k_ref.shape[2]
    C = x_ref.shape[2]

    qi = pl.program_id(1)
    ki = pl.program_id(2)

    @pl.when(ki == 0)
    def _init():
        m_ref[...] = jnp.full(m_ref.shape, -jnp.inf, jnp.float32)
        l_ref[...] = jnp.zeros(l_ref.shape, jnp.float32)
        acc_ref[...] = jnp.zeros(acc_ref.shape, jnp.float32)

    def flash_update(masked):
        s = jnp.einsum('hqd,hkd->hqk', q_ref[0], k_ref[0],
                       preferred_element_type=jnp.float32)        # (H,TQ,TK)
        if masked:
            row = qi * TQ + lax.broadcasted_iota(jnp.int32, (TQ, TK), 0)
            col = ki * TK + lax.broadcasted_iota(jnp.int32, (TQ, TK), 1)
            s = jnp.where((col <= row)[None, :, :], s, -jnp.inf)

        # m/l are stored lane-dense (replicated across 128 lanes); the per-row
        # value is recovered with a cheap XLU lane-reduce, so all scratch
        # loads/stores in the inner loop are full-lane (no masked vst/vld).
        m_prev = m_ref[...]                                       # (H,TQ,128)
        m_prev_row = jnp.max(m_prev, axis=-1, keepdims=True)      # (H,TQ,1)
        s_max = jnp.max(s, axis=-1, keepdims=True)                # (H,TQ,1)
        m_row = jnp.maximum(m_prev_row, s_max)                    # (H,TQ,1)
        alpha = jnp.exp(m_prev_row - m_row)                       # (H,TQ,1)
        p = jnp.exp(s - m_row)                                    # (H,TQ,TK)

        l_ref[...] = alpha * l_ref[...] + jnp.sum(p, axis=-1, keepdims=True)
        acc_ref[...] = alpha * acc_ref[...] + jnp.einsum(
            'hqk,hkd->hqd', p.astype(jnp.bfloat16), v_ref[0],
            preferred_element_type=jnp.float32)
        m_ref[...] = jnp.maximum(m_prev, s_max)                   # replicated

    # tq == tk: ki < qi  -> fully below the diagonal, no mask needed
    @pl.when(ki < qi)
    def _update_unmasked():
        flash_update(masked=False)

    # ki == qi -> diagonal-straddling tile: build the causal mask
    @pl.when(ki == qi)
    def _update_masked():
        flash_update(masked=True)

    # ki > qi -> fully above the diagonal: compute skipped; the K/V DMA is
    # also elided because the wrapper clamps their block index to min(j, i).

    @pl.when(ki == pl.num_programs(2) - 1)
    def _finalize():
        l_row = jnp.max(l_ref[...], axis=-1, keepdims=True)       # (H,TQ,1)
        inv_l = pl.reciprocal(l_row, approx=True)                 # EUP
        y = acc_ref[...] * inv_l                                  # (H,TQ,hd) f32

        # attention output projection: one K=C MXU matmul (concat heads via a
        # single transpose + reshape once per q-tile; no per-head dot chain)
        y2 = jnp.transpose(y, (1, 0, 2)).reshape(TQ, C)           # (TQ, C)
        proj = jnp.dot(y2.astype(jnp.bfloat16), wpr_ref[...],
                       preferred_element_type=jnp.float32)

        x0 = x_ref[0].astype(jnp.float32)
        x1 = x0 + proj + bpr_ref[...]                             # residual 1

        eps = 1e-5
        mu = jnp.mean(x1, axis=-1, keepdims=True)
        var = jnp.mean((x1 - mu) ** 2, axis=-1, keepdims=True)
        x2n = (x1 - mu) * lax.rsqrt(var + eps) * g2_ref[...] + b2_ref[...]

        h1 = jnp.dot(x2n.astype(jnp.bfloat16), wfc_ref[...],
                     preferred_element_type=jnp.float32) + bfc_ref[...]
        # bf16 GELU(tanh): halves EUP time on v6e/v7x, operand of next matmul
        # is bf16 anyway.
        h1 = jax.nn.gelu(h1.astype(jnp.bfloat16), approximate=True)
        mlp = jnp.dot(h1, wp2_ref[...],
                      preferred_element_type=jnp.float32) + bp2_ref[...]

        o_ref[0] = (x1 + mlp).astype(o_ref.dtype)                 # residual 2


# ------------------------------- wrapper ------------------------------------
def _vmem_limit_bytes():
    # v5e/v6e: 128 MiB VMEM/core -> 48 MiB scoped limit; v7x: 64 MiB -> 32 MiB.
    try:
        cap = int(pltpu.get_tpu_info().vmem_capacity_bytes)
    except Exception:
        cap = 128 * 1024 * 1024
    return int(min(48 * 1024 * 1024, cap // 2))


def gpt2_block(x, params, n_head, tq=None):
    B, T, C = x.shape
    assert C % n_head == 0
    hd = C // n_head
    (g1, b1, wqkv, bqkv, wpr, bpr, g2, b2, wfc, bfc, wp2, bp2) = params

    if tq is None:
        # Sweep candidate: 512 on v5e/v6e (128 MiB VMEM); keep <=256 on v7x.
        tq = min(T, 256)
    assert T % tq == 0, "T must be divisible by the query tile"
    tk = tq                                    # causal clamp below assumes tq == tk
    n_q, n_k = T // tq, T // tk

    # bf16 weights: 2x less HBM/VMEM traffic + bf16 MXU peak (f32 accumulate).
    wqkv_b = wqkv.astype(jnp.bfloat16)
    wpr_b = wpr.astype(jnp.bfloat16)
    wfc_b = wfc.astype(jnp.bfloat16)
    wp2_b = wp2.astype(jnp.bfloat16)
    # TODO(synk): for C >= ~1280 on v7x, split kernel 2 into (attn + c_proj +
    # residual) and (LN2 + MLP + residual) calls, or stream wfc/wp2 over a 4C
    # grid axis, instead of keeping the full 9*C^2 weight slab resident.

    vmem_limit = _vmem_limit_bytes()
    single = pl.Buffered(1)                    # constant-index blocks: no 2x buffer

    def const_spec(shape):
        return pl.BlockSpec(shape, lambda *_: (0, 0), pipeline_mode=single)

    # ---------------- kernel 1: LN1 + QKV projection ----------------
    qkv_cost = pl.CostEstimate(
        flops=int(2 * B * T * C * 3 * C),
        transcendentals=int(B * T),
        bytes_accessed=int(B * T * C * 4 + 3 * C * C * 2 + 3 * B * T * C * 2))
    q, k, v = pl.pallas_call(
        functools.partial(_ln_qkv_kernel, n_head),
        out_shape=(jax.ShapeDtypeStruct((B, n_head, T, hd), jnp.bfloat16),
                   jax.ShapeDtypeStruct((B, n_head, T, hd), jnp.bfloat16),
                   jax.ShapeDtypeStruct((B, n_head, T, hd), jnp.bfloat16)),
        grid_spec=pltpu.PrefetchScalarGridSpec(
            num_scalar_prefetch=0,
            grid=(B, n_q),
            in_specs=[
                pl.BlockSpec((1, tq, C), lambda b, i: (b, i, 0)),      # x
                const_spec((1, C)), const_spec((1, C)),                # ln_1 g,b
                const_spec((C, 3 * C)), const_spec((1, 3 * C)),        # c_attn
            ],
            out_specs=(
                pl.BlockSpec((1, n_head, tq, hd), lambda b, i: (b, 0, i, 0)),
                pl.BlockSpec((1, n_head, tq, hd), lambda b, i: (b, 0, i, 0)),
                pl.BlockSpec((1, n_head, tq, hd), lambda b, i: (b, 0, i, 0)),
            )),
        compiler_params=pltpu.CompilerParams(
            dimension_semantics=("parallel", "parallel"),
            vmem_limit_bytes=vmem_limit),
        cost_estimate=qkv_cost,
    )(x, g1, b1, wqkv_b, bqkv)

    # ------- kernel 2: flash attn + c_proj + residual + LN2 + MLP + residual -
    # K/V blocks above the causal diagonal are never fetched: the index map
    # clamps to the previous (diagonal) block so Pallas elides the DMA.
    kv_idx = lambda b, i, j: (b, 0, jnp.minimum(j, i), 0)

    attn_flops = (2 * B * T * T * C                     # qk^T + p@v (causal ~1/2)
                  + 2 * B * T * C * C                   # attn c_proj
                  + 16 * B * T * C * C)                 # MLP (fc + proj)
    kv_bytes = 2 * B * T * C * 2 * (n_q + 1) // 2       # k,v re-streamed ~(n_q+1)/2x
    attn_cost = pl.CostEstimate(
        flops=int(attn_flops),
        transcendentals=int(B * n_head * T * T // 2 + B * T * 4 * C),
        bytes_accessed=int(2 * B * T * C * 4 + B * T * C * 2 + kv_bytes
                           + 9 * C * C * 2))
    out = pl.pallas_call(
        functools.partial(_attn_mlp_kernel, n_head),
        out_shape=jax.ShapeDtypeStruct((B, T, C), x.dtype),
        grid_spec=pltpu.PrefetchScalarGridSpec(
            num_scalar_prefetch=0,
            grid=(B, n_q, n_k),
            in_specs=[
                pl.BlockSpec((1, tq, C), lambda b, i, j: (b, i, 0)),              # x
                pl.BlockSpec((1, n_head, tq, hd), lambda b, i, j: (b, 0, i, 0)),  # q
                pl.BlockSpec((1, n_head, tk, hd), kv_idx),                        # k
                pl.BlockSpec((1, n_head, tk, hd), kv_idx),                        # v
                const_spec((C, C)), const_spec((1, C)),                 # c_proj
                const_spec((1, C)), const_spec((1, C)),                 # ln_2 g,b
                const_spec((C, 4 * C)), const_spec((1, 4 * C)),         # c_fc
                const_spec((4 * C, C)), const_spec((1, C)),             # mlp c_proj
            ],
            out_specs=pl.BlockSpec((1, tq, C), lambda b, i, j: (b, i, 0)),
            scratch_shapes=[
                pltpu.VMEM((n_head, tq, 128), jnp.float32),   # m (lane-dense, replicated)
                pltpu.VMEM((n_head, tq, 128), jnp.float32),   # l (lane-dense, replicated)
                pltpu.VMEM((n_head, tq, hd), jnp.float32),    # acc
            ]),
        compiler_params=pltpu.CompilerParams(
            # v7x (2 TCs): make sure B * n_q >= 2 so both cores get work.
            dimension_semantics=("parallel", "parallel", "arbitrary"),
            vmem_limit_bytes=vmem_limit),
        cost_estimate=attn_cost,
    )(x, q, k, v, wpr_b, bpr, g2, b2, wfc_b, bfc, wp2_b, bp2)

    return out


# --------------------------- pure-JAX reference ------------------------------
def gpt2_block_ref(x, params, n_head):
    (g1, b1, wqkv, bqkv, wpr, bpr, g2, b2, wfc, bfc, wp2, bp2) = params
    B, T, C = x.shape
    hd = C // n_head
    eps = 1e-5

    def ln(z, g, b):
        mu = jnp.mean(z, axis=-1, keepdims=True)
        var = jnp.mean((z - mu) ** 2, axis=-1, keepdims=True)
        return (z - mu) / jnp.sqrt(var + eps) * g + b

    xn = ln(x, g1[0], b1[0])
    qkv = xn @ wqkv + bqkv[0]
    q, k, v = jnp.split(qkv, 3, axis=-1)
    q = q.reshape(B, T, n_head, hd).transpose(0, 2, 1, 3)
    k = k.reshape(B, T, n_head, hd).transpose(0, 2, 1, 3)
    v = v.reshape(B, T, n_head, hd).transpose(0, 2, 1, 3)
    s = jnp.einsum('bhqd,bhkd->bhqk', q, k) / jnp.sqrt(hd)
    mask = jnp.tril(jnp.ones((T, T), bool))
    s = jnp.where(mask, s, -jnp.inf)
    p = jax.nn.softmax(s, axis=-1)
    y = jnp.einsum('bhqk,bhkd->bhqd', p, v).transpose(0, 2, 1, 3).reshape(B, T, C)
    y = y @ wpr + bpr[0]
    x1 = x + y
    h1 = ln(x1, g2[0], b2[0]) @ wfc + bfc[0]
    h1 = jax.nn.gelu(h1, approximate=True)
    return x1 + (h1 @ wp2 + bp2[0])


# --------------------------------- main --------------------------------------
if __name__ == "__main__":
    # Small shapes, but T > tq so the causal-tiling paths (unmasked tile,
    # diagonal masked tile, skipped+DMA-elided tile) are all exercised.
    B, T, C, N_HEAD, TQ = 2, 16, 32, 4, 8

    key = jax.random.PRNGKey(0)
    ks = jax.random.split(key, 10)

    def linear_init(k, fan_in, fan_out):
        kw, kb = jax.random.split(k)
        bound = 1.0 / (fan_in ** 0.5)
        w = jax.random.uniform(kw, (fan_in, fan_out), jnp.float32, -bound, bound)
        b = jax.random.uniform(kb, (1, fan_out), jnp.float32, -bound, bound)
        return w, b

    g1 = jnp.ones((1, C), jnp.float32)
    b1 = jnp.zeros((1, C), jnp.float32)
    g2 = jnp.ones((1, C), jnp.float32)
    b2 = jnp.zeros((1, C), jnp.float32)
    wqkv, bqkv = linear_init(ks[1], C, 3 * C)
    wpr, bpr = linear_init(ks[2], C, C)
    wfc, bfc = linear_init(ks[3], C, 4 * C)
    wp2, bp2 = linear_init(ks[4], 4 * C, C)
    params = (g1, b1, wqkv, bqkv, wpr, bpr, g2, b2, wfc, bfc, wp2, bp2)

    x = jax.random.normal(ks[0], (B, T, C), jnp.float32)

    out = gpt2_block(x, params, N_HEAD, tq=TQ)
    out = jax.block_until_ready(out)

    ref = gpt2_block_ref(x, params, N_HEAD)
    assert out.shape == (B, T, C)
    # bf16 matmul operands, bf16 GELU and approx softmax reciprocal vs. an
    # all-f32 reference: compare at bf16-level tolerance.
    assert jnp.allclose(out, ref, atol=3e-2, rtol=3e-2), "mismatch vs. JAX reference"

    print("KERNEL_OK")
</pallas_src>

<mosaic_0001>
module attributes {stable_mosaic.version = 11 : i64} {
  func.func @_ln_qkv_kernel(%arg0: i32, %arg1: i32, %arg2: memref<1x8x32xf32, #tpu.memory_space<vmem>>, %arg3: memref<1x32xf32, #tpu.memory_space<vmem>>, %arg4: memref<1x32xf32, #tpu.memory_space<vmem>>, %arg5: memref<32x96xbf16, #tpu.memory_space<vmem>>, %arg6: memref<1x96xf32, #tpu.memory_space<vmem>>, %arg7: memref<1x4x8x8xbf16, #tpu.memory_space<vmem>>, %arg8: memref<1x4x8x8xbf16, #tpu.memory_space<vmem>>, %arg9: memref<1x4x8x8xbf16, #tpu.memory_space<vmem>>) attributes {dimension_semantics = [#tpu.dimension_semantics<parallel>, #tpu.dimension_semantics<parallel>], iteration_bounds = array<i64: 2, 2>, scalar_prefetch = 0 : i64, scratch_operands = 0 : i64, tpu.core_type = #tpu.core_type<tc>, window_params = [{transform_indices = @transform_0, window_bounds = array<i64: 1, 8, 32>}, {pipeline_mode = #tpu.pipeline_mode<synchronous>, transform_indices = @transform_1, window_bounds = array<i64: 1, 32>}, {pipeline_mode = #tpu.pipeline_mode<synchronous>, transform_indices = @transform_2, window_bounds = array<i64: 1, 32>}, {pipeline_mode = #tpu.pipeline_mode<synchronous>, transform_indices = @transform_3, window_bounds = array<i64: 32, 96>}, {pipeline_mode = #tpu.pipeline_mode<synchronous>, transform_indices = @transform_4, window_bounds = array<i64: 1, 96>}, {transform_indices = @transform_5, window_bounds = array<i64: 1, 4, 8, 8>}, {transform_indices = @transform_6, window_bounds = array<i64: 1, 4, 8, 8>}, {transform_indices = @transform_7, window_bounds = array<i64: 1, 4, 8, 8>}]} {
    %c0 = arith.constant 0 : index
    %c0_0 = arith.constant 0 : index
    %c0_1 = arith.constant 0 : index
    %0 = vector.load %arg2[%c0, %c0_0, %c0_1] : memref<1x8x32xf32, #tpu.memory_space<vmem>>, vector<1x8x32xf32>
    %1 = vector.shape_cast %0 : vector<1x8x32xf32> to vector<8x32xf32>
    %cst = arith.constant dense<0.000000e+00> : vector<8xf32>
    %2 = vector.multi_reduction <add>, %1, %cst [1] : vector<8x32xf32> to vector<8xf32>
    %3 = vector.shape_cast %2 : vector<8xf32> to vector<8x1xf32>
    %cst_2 = arith.constant 3.200000e+01 : f32
    %4 = vector.broadcast %cst_2 : f32 to vector<8x1xf32>
    %5 = arith.divf %3, %4 : vector<8x1xf32>
    %6 = vector.broadcast %5 : vector<8x1xf32> to vector<8x32xf32>
    %7 = arith.subf %1, %6 : vector<8x32xf32>
    %8 = arith.mulf %7, %7 : vector<8x32xf32>
    %cst_3 = arith.constant dense<0.000000e+00> : vector<8xf32>
    %9 = vector.multi_reduction <add>, %8, %cst_3 [1] : vector<8x32xf32> to vector<8xf32>
    %10 = vector.shape_cast %9 : vector<8xf32> to vector<8x1xf32>
    %cst_4 = arith.constant 3.200000e+01 : f32
    %11 = vector.broadcast %cst_4 : f32 to vector<8x1xf32>
    %12 = arith.divf %10, %11 : vector<8x1xf32>
    %13 = vector.broadcast %5 : vector<8x1xf32> to vector<8x32xf32>
    %14 = arith.subf %1, %13 : vector<8x32xf32>
    %cst_5 = arith.constant 9.99999974E-6 : f32
    %15 = vector.broadcast %cst_5 : f32 to vector<8x1xf32>
    %16 = arith.addf %12, %15 : vector<8x1xf32>
    %17 = math.rsqrt %16 : vector<8x1xf32>
    %18 = vector.broadcast %17 : vector<8x1xf32> to vector<8x32xf32>
    %19 = arith.mulf %14, %18 : vector<8x32xf32>
    %c0_6 = arith.constant 0 : index
    %c0_7 = arith.constant 0 : index
    %20 = vector.load %arg3[%c0_6, %c0_7] : memref<1x32xf32, #tpu.memory_space<vmem>>, vector<1x32xf32>
    %21 = vector.broadcast %20 : vector<1x32xf32> to vector<8x32xf32>
    %22 = arith.mulf %19, %21 : vector<8x32xf32>
    %c0_8 = arith.constant 0 : index
    %c0_9 = arith.constant 0 : index
    %23 = vector.load %arg4[%c0_8, %c0_9] : memref<1x32xf32, #tpu.memory_space<vmem>>, vector<1x32xf32>
    %24 = vector.broadcast %23 : vector<1x32xf32> to vector<8x32xf32>
    %25 = arith.addf %22, %24 : vector<8x32xf32>
    %26 = arith.truncf %25 : vector<8x32xf32> to vector<8x32xbf16>
    %c0_10 = arith.constant 0 : index
    %c0_11 = arith.constant 0 : index
    %27 = vector.load %arg5[%c0_10, %c0_11] : memref<32x96xbf16, #tpu.memory_space<vmem>>, vector<32x96xbf16>
    %cst_12 = arith.constant dense<0.000000e+00> : vector<8x96xf32>
    %28 = tpu.matmul %26, %27, %cst_12 {dimension_numbers = #tpu.dot_dimension_numbers<[1], [0], [0], [1], [0, 0, 1, 1], [], []>} : vector<8x32xbf16>, vector<32x96xbf16>, vector<8x96xf32> -> vector<8x96xf32>
    %c0_13 = arith.constant 0 : index
    %c0_14 = arith.constant 0 : index
    %29 = vector.load %arg6[%c0_13, %c0_14] : memref<1x96xf32, #tpu.memory_space<vmem>>, vector<1x96xf32>
    %30 = vector.broadcast %29 : vector<1x96xf32> to vector<8x96xf32>
    %31 = arith.addf %28, %30 : vector<8x96xf32>
    %32 = vector.extract_strided_slice %31 {offsets = [0, 0], sizes = [8, 32], strides = [1, 1]} : vector<8x96xf32> to vector<8x32xf32>
    %cst_15 = arith.constant 0.353553385 : f32
    %33 = vector.broadcast %cst_15 : f32 to vector<8x32xf32>
    %34 = arith.mulf %32, %33 : vector<8x32xf32>
    %35 = vector.shape_cast %34 : vector<8x32xf32> to vector<8x4x8xf32>
    %36 = tpu.transpose %35, [1, 0, 2] : vector<8x4x8xf32> -> vector<4x8x8xf32>
    %37 = arith.truncf %36 : vector<4x8x8xf32> to vector<4x8x8xbf16>
    %c0_16 = arith.constant 0 : index
    %c0_17 = arith.constant 0 : index
    %c0_18 = arith.constant 0 : index
    %c0_19 = arith.constant 0 : index
    %38 = vector.load %arg7[%c0_16, %c0_17, %c0_18, %c0_19] : memref<1x4x8x8xbf16, #tpu.memory_space<vmem>>, vector<1x4x8x8xbf16>
    %39 = vector.shape_cast %38 : vector<1x4x8x8xbf16> to vector<4x8x8xbf16>
    %40 = vector.shape_cast %37 : vector<4x8x8xbf16> to vector<1x4x8x8xbf16>
    tpu.vector_store %arg7[%c0_16, %c0_17, %c0_18, %c0_19], %40 {strides = array<i32>} : memref<1x4x8x8xbf16, #tpu.memory_space<vmem>>, vector<1x4x8x8xbf16>,
    %41 = vector.extract_strided_slice %31 {offsets = [0, 32], sizes = [8, 32], strides = [1, 1]} : vector<8x96xf32> to vector<8x32xf32>
    %42 = vector.shape_cast %41 : vector<8x32xf32> to vector<8x4x8xf32>
    %43 = tpu.transpose %42, [1, 0, 2] : vector<8x4x8xf32> -> vector<4x8x8xf32>
    %44 = arith.truncf %43 : vector<4x8x8xf32> to vector<4x8x8xbf16>
    %c0_20 = arith.constant 0 : index
    %c0_21 = arith.constant 0 : index
    %c0_22 = arith.constant 0 : index
    %c0_23 = arith.constant 0 : index
    %45 = vector.load %arg8[%c0_20, %c0_21, %c0_22, %c0_23] : memref<1x4x8x8xbf16, #tpu.memory_space<vmem>>, vector<1x4x8x8xbf16>
    %46 = vector.shape_cast %45 : vector<1x4x8x8xbf16> to vector<4x8x8xbf16>
    %47 = vector.shape_cast %44 : vector<4x8x8xbf16> to vector<1x4x8x8xbf16>
    tpu.vector_store %arg8[%c0_20, %c0_21, %c0_22, %c0_23], %47 {strides = array<i32>} : memref<1x4x8x8xbf16, #tpu.memory_space<vmem>>, vector<1x4x8x8xbf16>,
    %48 = vector.extract_strided_slice %31 {offsets = [0, 64], sizes = [8, 32], strides = [1, 1]} : vector<8x96xf32> to vector<8x32xf32>
    %49 = vector.shape_cast %48 : vector<8x32xf32> to vector<8x4x8xf32>
    %50 = tpu.transpose %49, [1, 0, 2] : vector<8x4x8xf32> -> vector<4x8x8xf32>
    %51 = arith.truncf %50 : vector<4x8x8xf32> to vector<4x8x8xbf16>
    %c0_24 = arith.constant 0 : index
    %c0_25 = arith.constant 0 : index
    %c0_26 = arith.constant 0 : index
    %c0_27 = arith.constant 0 : index
    %52 = vector.load %arg9[%c0_24, %c0_25, %c0_26, %c0_27] : memref<1x4x8x8xbf16, #tpu.memory_space<vmem>>, vector<1x4x8x8xbf16>
    %53 = vector.shape_cast %52 : vector<1x4x8x8xbf16> to vector<4x8x8xbf16>
    %54 = vector.shape_cast %51 : vector<4x8x8xbf16> to vector<1x4x8x8xbf16>
    tpu.vector_store %arg9[%c0_24, %c0_25, %c0_26, %c0_27], %54 {strides = array<i32>} : memref<1x4x8x8xbf16, #tpu.memory_space<vmem>>, vector<1x4x8x8xbf16>,
    return
  }
  func.func @transform_0(%arg0: i32, %arg1: i32) -> (i32, i32, i32) {
    %c0_i32 = arith.constant 0 : i32
    %c0_i32_0 = arith.constant 0 : i32
    return %arg0, %arg1, %c0_i32 : i32, i32, i32
  }
  func.func @transform_1(%arg0: i32, %arg1: i32) -> (i32, i32) {
    %c0_i32 = arith.constant 0 : i32
    %c0_i32_0 = arith.constant 0 : i32
    %c0_i32_1 = arith.constant 0 : i32
    return %c0_i32, %c0_i32_0 : i32, i32
  }
  func.func @transform_2(%arg0: i32, %arg1: i32) -> (i32, i32) {
    %c0_i32 = arith.constant 0 : i32
    %c0_i32_0 = arith.constant 0 : i32
    %c0_i32_1 = arith.constant 0 : i32
    return %c0_i32, %c0_i32_0 : i32, i32
  }
  func.func @transform_3(%arg0: i32, %arg1: i32) -> (i32, i32) {
    %c0_i32 = arith.constant 0 : i32
    %c0_i32_0 = arith.constant 0 : i32
    %c0_i32_1 = arith.constant 0 : i32
    return %c0_i32, %c0_i32_0 : i32, i32
  }
  func.func @transform_4(%arg0: i32, %arg1: i32) -> (i32, i32) {
    %c0_i32 = arith.constant 0 : i32
    %c0_i32_0 = arith.constant 0 : i32
    %c0_i32_1 = arith.constant 0 : i32
    return %c0_i32, %c0_i32_0 : i32, i32
  }
  func.func @transform_5(%arg0: i32, %arg1: i32) -> (i32, i32, i32, i32) {
    %c0_i32 = arith.constant 0 : i32
    %c0_i32_0 = arith.constant 0 : i32
    %c0_i32_1 = arith.constant 0 : i32
    return %arg0, %c0_i32, %arg1, %c0_i32_0 : i32, i32, i32, i32
  }
  func.func @transform_6(%arg0: i32, %arg1: i32) -> (i32, i32, i32, i32) {
    %c0_i32 = arith.constant 0 : i32
    %c0_i32_0 = arith.constant 0 : i32
    %c0_i32_1 = arith.constant 0 : i32
    return %arg0, %c0_i32, %arg1, %c0_i32_0 : i32, i32, i32, i32
  }
  func.func @transform_7(%arg0: i32, %arg1: i32) -> (i32, i32, i32, i32) {
    %c0_i32 = arith.constant 0 : i32
    %c0_i32_0 = arith.constant 0 : i32
    %c0_i32_1 = arith.constant 0 : i32
    return %arg0, %c0_i32, %arg1, %c0_i32_0 : i32, i32, i32, i32
  }
}

</mosaic_0001>

<llo_original>
// kernel: tpu_custom_call.1
$region0: #{tpu_custom_call.1}
  #allocation0 [shape = 'u32[]', space=smem, size = 0x4, offset = 0x4, fixed_abs, tag = 'smem constant byte address 0x4 - core index']
  #allocation1 [shape = 'u32[144,128]{1,0:T(1,128)}', space=vmem, size = 0x12000, scoped, tag = 'internal scratch']
  %s0 = inlined_call_operand.hbm [shape: f32[2,16,32], index: 0, kind: input, shape index: {}]
  %s1 = inlined_call_operand.vmem [shape: f32[1,32], index: 1, kind: input, shape index: {}]
  %s2 = inlined_call_operand.vmem [shape: f32[1,32], index: 2, kind: input, shape index: {}]
  %s3 = inlined_call_operand.hbm [shape: bf16[32,96], index: 3, kind: input, shape index: {}]
  %s4 = inlined_call_operand.vmem [shape: f32[1,96], index: 4, kind: input, shape index: {}]
  %s5 = inlined_call_operand.vmem [shape: bf16[2,4,16,8], index: 5, kind: output, shape index: {0}]
  %s6 = inlined_call_operand.vmem [shape: bf16[2,4,16,8], index: 6, kind: output, shape index: {1}]
  %s7 = inlined_call_operand.vmem [shape: bf16[2,4,16,8], index: 7, kind: output, shape index: {2}]
  %8 = xla_tuple %s5, %s6, %s7
  %s9 = sld [smem:[#allocation0]]
  $region188: #{tpu_custom_call.1} parent=0
    _
  %s11 = ssub.s32 1, %s9
  %s12 = scalar_select 0, %s11, %s9
  $region1: #{tpu_custom_call.1} parent=0
    #allocation2 [shape = 'u8[8192]{0}', space=vmem, size = 0x2000, scoped, tag = 'input window, operand 0']
    #allocation3 [shape = 's32[2]{0}', space=sflag, size = 0x8, scoped, tag = 'scoped memory for tpu_custom_call.1']
    #allocation4 [shape = 'u8[8192]{0}', space=vmem, size = 0x2000, scoped, tag = 'input window, operand 3, single buffered']
    #allocation5 [shape = 's32[1]{0}', space=sflag, size = 0x4, scoped, tag = 'scoped memory for tpu_custom_call.1']
    #allocation6 [shape = 'u8[16384]{0}', space=vmem, size = 0x4000, scoped, tag = 'output window, operand 0']
    #allocation7 [shape = 'u8[16384]{0}', space=vmem, size = 0x4000, scoped, tag = 'output window, operand 1']
    #allocation8 [shape = 'u8[16384]{0}', space=vmem, size = 0x4000, scoped, tag = 'output window, operand 2']
    %13 = vsyncpa [#allocation3], 0
    %s14 = scalar_lea.sflag [#allocation3], 1
    %15 = vsyncpa %s14, 0
    %16 = vsyncpa [#allocation5], 0
    loop: start=0, step=1, limit=6
    $region2: #{tpu_custom_call.1} parent=1 // loop_pre_header
      _
    $region3: #{tpu_custom_call.1} parent=1 // loop_header
      %s18 = sphi 0, %s22
      %p19 = scmp.ge.s32.totalorder %s18, 6
      %s25 = sphi 0, %s37
      %s26 = sphi 0, %s33
      %s27 = sphi 0, %s25
      %s28 = sphi 0, %s26
      %s29 = sphi 0, %s27
      %s30 = sphi 0, %s28
      %s42 = sphi 0, %s44
      %s45 = sphi 0, %s42
      %s46 = sphi 0, %s45
      %s62 = sphi 0, %s46
      %s66 = sphi 0, %s66
      %s68 = sphi 0, %s66
      %s69 = sphi 0, %s68
      %s83 = sphi 0, %s69
      %s87 = sphi 0, %s87
      %s89 = sphi 0, %s87
      %s90 = sphi 0, %s89
      %s104 = sphi 0, %s90
      %s108 = sphi 0, %s108
      %s110 = sphi 0, %s108
      %s111 = sphi 0, %s110
      %s125 = sphi 0, %s111
      %s129 = sphi 0, %s129
      %s131 = sphi 0, %s129
      %s132 = sphi 0, %s131
      %s146 = sphi 0, %s132
      %s154 = sphi 0, %s156
      %s157 = sphi 0, %s154
      %s158 = sphi 0, %s157
      %s174 = sphi 0, %s158
      %s182 = sphi 0, %s184
      %s185 = sphi 0, %s182
      %s186 = sphi 0, %s185
      %s202 = sphi 0, %s186
      %s210 = sphi 0, %s212
      %s213 = sphi 0, %s210
      %s214 = sphi 0, %s213
      %s230 = sphi 0, %s214
    $region4: #{tpu_custom_call.1} parent=1 // loop_header_branch
      %21 = sbr.rel (%p19) target = $region8
    $region5: #{tpu_custom_call.1} parent=1 // loop_body
      %s23 = ssub.s32 %s18, 1
      %s24 = ssub.s32 %s18, 2
      %s31 = sadd.s32 1, %s26
      %p32 = scmp.ge.s32.totalorder %s31, 2
      %s33 = scalar_select %p32, 0, %s31
      %s34 = sadd.s32 1, %s25
      %s35 = scalar_select %p32, %s34, %s25
      %p36 = scmp.ge.s32.totalorder %s35, 2
      %s37 = scalar_select %p36, 0, %s35
      %s38 = ssub.s32 %s25, %s37
      %s39 = ssub.s32 %s26, %s33
      %s40 = sor.u32 %s38, %s39
      %p41 = scmp.eq.s32.totalorder %s40, 0
      %s43 = sadd.s32 %s42, 1
      %s44 = scalar_select %p41, %s42, %s43
      %p47 = pneg %p41
      %p48 = scmp.eq.s32.totalorder %s18, 3
      %p49 = por %p47, %p48
      %p50 = scmp.ne.s32.totalorder %s42, %s45
      %p51 = scmp.eq.s32.totalorder %s18, 0
      %p52 = por %p50, %p51
      %p53 = scmp.ne.s32.totalorder %s42, %s45
      %p54 = scmp.eq.s32.totalorder %s23, 3
      %p55 = por %p53, %p54
      %p56 = scmp.ne.s32.totalorder %s45, %s46
      %p57 = scmp.eq.s32.totalorder %s23, 0
      %p58 = por %p56, %p57
      %p59 = scmp.ne.s32.totalorder %s45, %s46
      %p60 = scmp.eq.s32.totalorder %s24, 3
      %p61 = por %p59, %p60
      %p63 = scmp.ne.s32.totalorder %s46, %s62
      %p64 = scmp.eq.s32.totalorder %s24, 0
      %p65 = por %p63, %p64
      %s67 = sadd.s32 %s66, 1
      %p70 = scmp.eq.s32.totalorder %s18, 3
      %p71 = scmp.ne.s32.totalorder %s66, %s68
      %p72 = scmp.eq.s32.totalorder %s18, 0
      %p73 = por %p71, %p72
      %p74 = scmp.ne.s32.totalorder %s66, %s68
      %p75 = scmp.eq.s32.totalorder %s23, 3
      %p76 = por %p74, %p75
      %p77 = scmp.ne.s32.totalorder %s68, %s69
      %p78 = scmp.eq.s32.totalorder %s23, 0
      %p79 = por %p77, %p78
      %p80 = scmp.ne.s32.totalorder %s68, %s69
      %p81 = scmp.eq.s32.totalorder %s24, 3
      %p82 = por %p80, %p81
      %p84 = scmp.ne.s32.totalorder %s69, %s83
      %p85 = scmp.eq.s32.totalorder %s24, 0
      %p86 = por %p84, %p85
      %s88 = sadd.s32 %s87, 1
      %p91 = scmp.eq.s32.totalorder %s18, 3
      %p92 = scmp.ne.s32.totalorder %s87, %s89
      %p93 = scmp.eq.s32.totalorder %s18, 0
      %p94 = por %p92, %p93
      %p95 = scmp.ne.s32.totalorder %s87, %s89
      %p96 = scmp.eq.s32.totalorder %s23, 3
      %p97 = por %p95, %p96
      %p98 = scmp.ne.s32.totalorder %s89, %s90
      %p99 = scmp.eq.s32.totalorder %s23, 0
      %p100 = por %p98, %p99
      %p101 = scmp.ne.s32.totalorder %s89, %s90
      %p102 = scmp.eq.s32.totalorder %s24, 3
      %p103 = por %p101, %p102
      %p105 = scmp.ne.s32.totalorder %s90, %s104
      %p106 = scmp.eq.s32.totalorder %s24, 0
      %p107 = por %p105, %p106
      %s109 = sadd.s32 %s108, 1
      %p112 = scmp.eq.s32.totalorder %s18, 3
      %p113 = scmp.ne.s32.totalorder %s108, %s110
      %p114 = scmp.eq.s32.totalorder %s18, 0
      %p115 = por %p113, %p114
      %p116 = scmp.ne.s32.totalorder %s108, %s110
      %p117 = scmp.eq.s32.totalorder %s23, 3
      %p118 = por %p116, %p117
      %p119 = scmp.ne.s32.totalorder %s110, %s111
      %p120 = scmp.eq.s32.totalorder %s23, 0
      %p121 = por %p119, %p120
      %p122 = scmp.ne.s32.totalorder %s110, %s111
      %p123 = scmp.eq.s32.totalorder %s24, 3
      %p124 = por %p122, %p123
      %p126 = scmp.ne.s32.totalorder %s111, %s125
      %p127 = scmp.eq.s32.totalorder %s24, 0
      %p128 = por %p126, %p127
      %s130 = sadd.s32 %s129, 1
      %p133 = scmp.eq.s32.totalorder %s18, 3
      %p134 = scmp.ne.s32.totalorder %s129, %s131
      %p135 = scmp.eq.s32.totalorder %s18, 0
      %p136 = por %p134, %p135
      %p137 = scmp.ne.s32.totalorder %s129, %s131
      %p138 = scmp.eq.s32.totalorder %s23, 3
      %p139 = por %p137, %p138
      %p140 = scmp.ne.s32.totalorder %s131, %s132
      %p141 = scmp.eq.s32.totalorder %s23, 0
      %p142 = por %p140, %p141
      %p143 = scmp.ne.s32.totalorder %s131, %s132
      %p144 = scmp.eq.s32.totalorder %s24, 3
      %p145 = por %p143, %p144
      %p147 = scmp.ne.s32.totalorder %s132, %s146
      %p148 = scmp.eq.s32.totalorder %s24, 0
      %p149 = por %p147, %p148
      %s150 = ssub.s32 %s25, %s37
      %s151 = ssub.s32 %s26, %s33
      %s152 = sor.u32 %s150, %s151
      %p153 = scmp.eq.s32.totalorder %s152, 0
      %s155 = sadd.s32 %s154, 1
      %s156 = scalar_select %p153, %s154, %s155
      %p159 = pneg %p153
      %p160 = scmp.eq.s32.totalorder %s18, 3
      %p161 = por %p159, %p160
      %p162 = scmp.ne.s32.totalorder %s154, %s157
      %p163 = scmp.eq.s32.totalorder %s18, 0
      %p164 = por %p162, %p163
      %p165 = scmp.ne.s32.totalorder %s154, %s157
      %p166 = scmp.eq.s32.totalorder %s23, 3
      %p167 = por %p165, %p166
      %p168 = scmp.ne.s32.totalorder %s157, %s158
      %p169 = scmp.eq.s32.totalorder %s23, 0
      %p170 = por %p168, %p169
      %p171 = scmp.ne.s32.totalorder %s157, %s158
      %p172 = scmp.eq.s32.totalorder %s24, 3
      %p173 = por %p171, %p172
      %p175 = scmp.ne.s32.totalorder %s158, %s174
      %p176 = scmp.eq.s32.totalorder %s24, 0
      %p177 = por %p175, %p176
      %s178 = ssub.s32 %s25, %s37
      %s179 = ssub.s32 %s26, %s33
      %s180 = sor.u32 %s178, %s179
      %p181 = scmp.eq.s32.totalorder %s180, 0
      %s183 = sadd.s32 %s182, 1
      %s184 = scalar_select %p181, %s182, %s183
      %p187 = pneg %p181
      %p188 = scmp.eq.s32.totalorder %s18, 3
      %p189 = por %p187, %p188
      %p190 = scmp.ne.s32.totalorder %s182, %s185
      %p191 = scmp.eq.s32.totalorder %s18, 0
      %p192 = por %p190, %p191
      %p193 = scmp.ne.s32.totalorder %s182, %s185
      %p194 = scmp.eq.s32.totalorder %s23, 3
      %p195 = por %p193, %p194
      %p196 = scmp.ne.s32.totalorder %s185, %s186
      %p197 = scmp.eq.s32.totalorder %s23, 0
      %p198 = por %p196, %p197
      %p199 = scmp.ne.s32.totalorder %s185, %s186
      %p200 = scmp.eq.s32.totalorder %s24, 3
      %p201 = por %p199, %p200
      %p203 = scmp.ne.s32.totalorder %s186, %s202
      %p204 = scmp.eq.s32.totalorder %s24, 0
      %p205 = por %p203, %p204
      %s206 = ssub.s32 %s25, %s37
      %s207 = ssub.s32 %s26, %s33
      %s208 = sor.u32 %s206, %s207
      %p209 = scmp.eq.s32.totalorder %s208, 0
      %s211 = sadd.s32 %s210, 1
      %s212 = scalar_select %p209, %s210, %s211
      %p215 = pneg %p209
      %p216 = scmp.eq.s32.totalorder %s18, 3
      %p217 = por %p215, %p216
      %p218 = scmp.ne.s32.totalorder %s210, %s213
      %p219 = scmp.eq.s32.totalorder %s18, 0
      %p220 = por %p218, %p219
      %p221 = scmp.ne.s32.totalorder %s210, %s213
      %p222 = scmp.eq.s32.totalorder %s23, 3
      %p223 = por %p221, %p222
      %p224 = scmp.ne.s32.totalorder %s213, %s214
      %p225 = scmp.eq.s32.totalorder %s23, 0
      %p226 = por %p224, %p225
      %p227 = scmp.ne.s32.totalorder %s213, %s214
      %p228 = scmp.eq.s32.totalorder %s24, 3
      %p229 = por %p227, %p228
      %p231 = scmp.ne.s32.totalorder %s214, %s230
      %p232 = scmp.eq.s32.totalorder %s24, 0
      %p233 = por %p231, %p232
      %p234 = scmp.le.s32.totalorder 1, %s18
      %p235 = scmp.lt.s32.totalorder %s18, 5
      %p236 = pnand %p234, %p235
      %p237 = pneg %p236
      // Predicated region
      $region9: #{tpu_custom_call.1} parent=5 // pred_check
        _
      $region10: #{tpu_custom_call.1} parent=5 // pred_check_branch
        %239 = sbr.rel (%p236) target = $region12
      $region11: #{tpu_custom_call.1} parent=5 // pred_region
        %s240 = ssub.s32 %s18, 1
        // Predicated region
        $region13: #{tpu_custom_call.1} parent=11 // pred_check
          %p241 = pneg %p79
        $region14: #{tpu_custom_call.1} parent=11 // pred_check_branch
          %243 = sbr.rel (%p241) target = $region16
        $region15: #{tpu_custom_call.1} parent=11 // pred_region
          _
        $region16: #{tpu_custom_call.1} parent=11 // pred_fallthru
          _
        // Predicated region
        $region17: #{tpu_custom_call.1} parent=11 // pred_check
          %p244 = pneg %p100
        $region18: #{tpu_custom_call.1} parent=11 // pred_check_branch
          %246 = sbr.rel (%p244) target = $region20
        $region19: #{tpu_custom_call.1} parent=11 // pred_region
          _
        $region20: #{tpu_custom_call.1} parent=11 // pred_fallthru
          _
        // Predicated region
        $region21: #{tpu_custom_call.1} parent=11 // pred_check
          %p247 = pneg %p121
        $region22: #{tpu_custom_call.1} parent=11 // pred_check_branch
          %249 = sbr.rel (%p247) target = $region24
        $region23: #{tpu_custom_call.1} parent=11 // pred_region
          %s251 = ssub.s32 256, 256
          %252 = vsyncadd [#allocation5], %s251
          %s253 = sshll.u32 [#allocation4], 4
          %s254 = int_to_ptr.vmem [resolvable:$true] %s253
          %259 = dma.hbm_to_vmem [thread:$0]  %s3, 256, %s254, [#allocation5], 64, 64, 4
        $region24: #{tpu_custom_call.1} parent=11 // pred_fallthru
          _
        // Predicated region
        $region25: #{tpu_custom_call.1} parent=11 // pred_check
          %p260 = pneg %p142
        $region26: #{tpu_custom_call.1} parent=11 // pred_check_branch
          %262 = sbr.rel (%p260) target = $region28
        $region27: #{tpu_custom_call.1} parent=11 // pred_region
          _
        $region28: #{tpu_custom_call.1} parent=11 // pred_fallthru
          _
      $region12: #{tpu_custom_call.1} parent=5 // pred_fallthru
        _
      %p263 = scmp.lt.s32.totalorder %s18, 4
      // Predicated region
      $region29: #{tpu_custom_call.1} parent=5 // pred_check
        %p264 = pneg %p263
      $region30: #{tpu_custom_call.1} parent=5 // pred_check_branch
        %266 = sbr.rel (%p264) target = $region32
      $region31: #{tpu_custom_call.1} parent=5 // pred_region
        // Predicated region
        $region33: #{tpu_custom_call.1} parent=31 // pred_check
          %p267 = pneg %p52
        $region34: #{tpu_custom_call.1} parent=31 // pred_check_branch
          %269 = sbr.rel (%p267) target = $region36
        $region35: #{tpu_custom_call.1} parent=31 // pred_region
          %s270 = sand.u32 %s42, 1
          %s271 = scalar_lea.sflag [#allocation3], %s270
          %s272 = sand.u32 %s42, 1
          %s273 = smul.addr %s272, 8
          %s274 = scalar_lea.vmem [#allocation2], %s273
          %s276 = ssub.s32 128, 128
          %277 = vsyncadd %s271, %s276
          %s278 = smul.addr %s25, 2
          %s279 = sadd.s32 %s26, %s278
          %s280 = smul.addr %s279, 128
          %s281 = scalar_lea.hbm %s0, %s280
          %s283 = sshll.u32 %s274, 4
          %s284 = int_to_ptr.vmem [resolvable:$true] %s283
          %286 = dma.hbm_to_vmem [thread:$0]  %s281, 128, %s284, %s271
        $region36: #{tpu_custom_call.1} parent=31 // pred_fallthru
          _
      $region32: #{tpu_custom_call.1} parent=5 // pred_fallthru
        _
      %p287 = scmp.le.s32.totalorder 1, %s18
      %p288 = scmp.lt.s32.totalorder %s18, 5
      %p289 = pnand %p287, %p288
      %p290 = pneg %p289
      // Predicated region
      $region37: #{tpu_custom_call.1} parent=5 // pred_check
        _
      $region38: #{tpu_custom_call.1} parent=5 // pred_check_branch
        %292 = sbr.rel (%p289) target = $region40
      $region39: #{tpu_custom_call.1} parent=5 // pred_region
        %s293 = ssub.s32 %s18, 1
        %s294 = sand.u32 %s45, 1
        %s295 = scalar_lea.sflag [#allocation3], %s294
        %s296 = sand.u32 %s45, 1
        %s297 = smul.addr %s296, 8
        %s298 = scalar_lea.vmem [#allocation2], %s297
        // Predicated region
        $region41: #{tpu_custom_call.1} parent=39 // pred_check
          %p299 = pneg %p58
        $region42: #{tpu_custom_call.1} parent=39 // pred_check_branch
          %301 = sbr.rel (%p299) target = $region44
        $region43: #{tpu_custom_call.1} parent=39 // pred_region
          %302 = dma.done %s295, 128
        $region44: #{tpu_custom_call.1} parent=39 // pred_fallthru
          _
        // Predicated region
        $region45: #{tpu_custom_call.1} parent=39 // pred_check
          %p303 = pneg %p121
        $region46: #{tpu_custom_call.1} parent=39 // pred_check_branch
          %305 = sbr.rel (%p303) target = $region48
        $region47: #{tpu_custom_call.1} parent=39 // pred_region
          %306 = dma.done [#allocation5], 256
        $region48: #{tpu_custom_call.1} parent=39 // pred_fallthru
          _
        %s307 = sand.u32 %s45, 1
        %s308 = scalar_lea.sflag [#allocation3], %s307
        %s309 = sand.u32 %s45, 1
        %s310 = smul.addr %s309, 8
        %s311 = scalar_lea.vmem [#allocation2], %s310
        %p312 = pneg %p58
        %p313 = pneg %p55
        %p314 = pneg %p79
        %p315 = pneg %p76
        %p316 = pneg %p100
        %p317 = pneg %p97
        %p318 = pneg %p121
        %p319 = pneg %p118
        %p320 = pneg %p142
        %p321 = pneg %p139
        %p322 = pneg %p170
        %p323 = pneg %p167
        %s324 = sand.u32 %s157, 1
        %s325 = sand.u32 %s157, 1
        %s326 = smul.addr %s325, 16
        %s327 = scalar_lea.vmem [#allocation6], %s326
        %p328 = pneg %p198
        %p329 = pneg %p195
        %s330 = sand.u32 %s185, 1
        %s331 = sand.u32 %s185, 1
        %s332 = smul.addr %s331, 16
        %s333 = scalar_lea.vmem [#allocation7], %s332
        %p334 = pneg %p226
        %p335 = pneg %p223
        %s336 = sand.u32 %s213, 1
        %s337 = sand.u32 %s213, 1
        %s338 = smul.addr %s337, 16
        %s339 = scalar_lea.vmem [#allocation8], %s338
        %v341 = vld [vmem:[%s298] sm:$0xff]
        %vm342 = vcmask 261120
        %v343 = vsel %vm342, %v341, 0.0
        %344 = vadd.xlane.f32.xlu0 %v343
        %v345 = vpop.xlane.xlu0 %344
        %v346 = vrcp.pop 32.0
        %v347 = vmul.f32 %v345, %v346
        %v348 = vsub.f32 %v341, %v347
        %v349 = vmul.f32 %v348, %v348
        %v350 = vsel %vm342, %v349, 0.0
        %351 = vadd.xlane.f32.xlu0 %v350
        %v352 = vpop.xlane.xlu0 %351
        %v353 = vmul.f32 %v352, %v346
        %v354 = vadd.f32 %v353, 1e-05
        %v355 = vrsqrt.pop %v354
        %v356 = vmul.f32 %v348, %v355
        %v357 = vld [vmem:[%s1] sm:$0x1]
        %v359 = vlaneseq
        %v360 = vshrl.u32 %v359, 7
        %v361 = vsub.s32 0, %v360
        %v362 = vrot.slane %v357, %v361
        %v364 = vmul.f32 %v356, %v362
        %v365 = vld [vmem:[%s2] sm:$0x1]
        %v367 = vlaneseq
        %v368 = vshrl.u32 %v367, 7
        %v369 = vsub.s32 0, %v368
        %v370 = vrot.slane %v365, %v369
        %v372 = vadd.f32 %v364, %v370
        %v373 = vpack.c.bf16 %v372, %v372
        %v374 = vld [vmem:[#allocation4] sm:$0xf]
        %v375 = vld [vmem:[#allocation4 + $0x4] sm:$0xf]
        %v376 = vld [vmem:[#allocation4 + $0x8] sm:$0xf]
        %v377 = vld [vmem:[#allocation4 + $0xc] sm:$0xf]
        %v378 = vld [vmem:[%s4] sm:$0x1]
        %v380 = vlaneseq
        %v381 = vshrl.u32 %v380, 7
        %v382 = vsub.s32 0, %v381
        %v383 = vrot.slane %v378, %v382
        %v389 = vunpack.c.l.b16 %v374
        %v390 = vunpack.c.l.b16 %v375
        %v391 = vunpack.c.l.b16 %v376
        %v392 = vunpack.c.l.b16 %v377
        %v393 = vpack.c.b16 %v390, %v389
        %v394 = vpack.c.b16 %v392, %v391
        %v398 = vsel %vm342, %v373, 0
        %400 = vmatprep.subr.bf16.mxu0 0
        %401 = vmatpush1.bf16.msra.mxu0 %v393
        %402 = vmatprep.subr.bf16.mxu0 0
        %403 = vmatpush1.bf16.msra.mxu0 %v394
        %404 = vmatprep.subr.bf16.mxu0 0
        %405 = vmatpush1.bf16.msra.mxu0 0
        %406 = vmatprep.subr.bf16.mxu0 0
        %407 = vmatpush1.bf16.msra.mxu0 0
        %408 = vmatprep.subr.bf16.mxu0 0
        %409 = vmatpush1.bf16.msra.mxu0 0
        %410 = vmatprep.subr.bf16.mxu0 0
        %411 = vmatpush1.bf16.msra.mxu0 0
        %412 = vmatprep.subr.bf16.mxu0 0
        %413 = vmatpush1.bf16.msra.mxu0 0
        %414 = vmatprep.subr.bf16.mxu0 0
        %415 = vmatpush1.bf16.msra.mxu0 0
        %416 = vmatprep.subr.bf16.mxu0 0
        %417 = vmatpush1.bf16.msra.mxu0 0
        %418 = vmatprep.subr.bf16.mxu0 0
        %419 = vmatpush1.bf16.msra.mxu0 0
        %420 = vmatprep.subr.bf16.mxu0 0
        %421 = vmatpush1.bf16.msra.mxu0 0
        %422 = vmatprep.subr.bf16.mxu0 0
        %423 = vmatpush1.bf16.msra.mxu0 0
        %424 = vmatprep.subr.bf16.mxu0 0
        %425 = vmatpush1.bf16.msra.mxu0 0
        %426 = vmatprep.subr.bf16.mxu0 0
        %427 = vmatpush1.bf16.msra.mxu0 0
        %428 = vmatprep.subr.bf16.mxu0 0
        %429 = vmatpush1.bf16.msra.mxu0 0
        %430 = vmatprep.subr.bf16.mxu0 0
        %431 = vmatpush1.bf16.msra.mxu0 0
        %432 = vmatprep.mubr.bf16.mxu0 0
        %433 = vmatmul.mubr.bf16.gmra.mrb[0].mxu0 %v398
        %v434 = vpop.f32.mrb[0].mxu0
        %v435 = vadd.f32 %v383, %v434
        %v436 = vpop.f32.mrb[0].mxu0
        %v437 = vpop.f32.mrb[0].mxu0
        %v438 = vpop.f32.mrb[0].mxu0
        %439 = vdwg.mxu0
        %v440 = vmul.f32 %v435, 0.35355338
        %442 = vrot.lane.b32.xlu0 %v440, 120
        %v443 = vpop.permute.xlu0 %442
        %445 = vrot.lane.b32.xlu0 %v440, 112
        %v446 = vpop.permute.xlu0 %445
        %448 = vrot.lane.b32.xlu0 %v440, 104
        %v449 = vpop.permute.xlu0 %448
        %v451 = vcombine.low %v440, %v446
        %v452 = vcombine.high %v440, %v446
        %v454 = vunpack.c.l.s4 1983009808
        %v455 = vunpack.c.0.s8 %v454
        %v456 = vlaneseq
        %v457 = vshrl.u32 %v456, 7
        %v458 = vsub.s32 %v455, %v457
        %v459 = vrot.slane %v451, %v458
        %v461 = vunpack.c.l.s4 1983009808
        %v462 = vunpack.c.0.s8 %v461
        %v463 = vlaneseq
        %v464 = vshrl.u32 %v463, 7
        %v465 = vsub.s32 %v462, %v464
        %v466 = vrot.slane %v452, %v465
        %v467 = vcombine.low %v443, %v449
        %v468 = vcombine.high %v443, %v449
        %v470 = vunpack.c.l.s4 1983009808
        %v471 = vunpack.c.0.s8 %v470
        %v472 = vlaneseq
        %v473 = vshrl.u32 %v472, 7
        %v474 = vsub.s32 %v471, %v473
        %v475 = vrot.slane %v467, %v474
        %v477 = vunpack.c.l.s4 1983009808
        %v478 = vunpack.c.0.s8 %v477
        %v479 = vlaneseq
        %v480 = vshrl.u32 %v479, 7
        %v481 = vsub.s32 %v478, %v480
        %v482 = vrot.slane %v468, %v481
        %v483 = vcombine.low %v459, %v475
        %v484 = vcombine.high %v459, %v475
        %v486 = vunpack.c.l.s4 1934713408
        %v487 = vunpack.c.0.s8 %v486
        %v488 = vlaneseq
        %v489 = vshrl.u32 %v488, 7
        %v490 = vsub.s32 %v487, %v489
        %v491 = vrot.slane %v483, %v490
        %v493 = vunpack.c.l.s4 1934713408
        %v494 = vunpack.c.0.s8 %v493
        %v495 = vlaneseq
        %v496 = vshrl.u32 %v495, 7
        %v497 = vsub.s32 %v494, %v496
        %v498 = vrot.slane %v484, %v497
        %v499 = vcombine.low %v466, %v482
        %v500 = vcombine.high %v466, %v482
        %v502 = vunpack.c.l.s4 1934713408
        %v503 = vunpack.c.0.s8 %v502
        %v504 = vlaneseq
        %v505 = vshrl.u32 %v504, 7
        %v506 = vsub.s32 %v503, %v505
        %v507 = vrot.slane %v499, %v506
        %v509 = vunpack.c.l.s4 1934713408
        %v510 = vunpack.c.0.s8 %v509
        %v511 = vlaneseq
        %v512 = vshrl.u32 %v511, 7
        %v513 = vsub.s32 %v510, %v512
        %v514 = vrot.slane %v500, %v513
        %v515 = vcombine.high %v491, 0.0
        %v516 = vcombine.high %v498, 0.0
        %v517 = vcombine.high %v507, 0.0
        %v518 = vcombine.high %v514, 0.0
        %v519 = vcombine.low %v491, %v498
        %v521 = vunpack.c.l.s4 1983009808
        %v522 = vunpack.c.0.s8 %v521
        %v523 = vlaneseq
        %v524 = vshrl.u32 %v523, 7
        %v525 = vsub.s32 %v522, %v524
        %v526 = vrot.slane %v519, %v525
        %v527 = vcombine.low %v515, %v516
        %v529 = vunpack.c.l.s4 1983009808
        %v530 = vunpack.c.0.s8 %v529
        %v531 = vlaneseq
        %v532 = vshrl.u32 %v531, 7
        %v533 = vsub.s32 %v530, %v532
        %v534 = vrot.slane %v527, %v533
        %v535 = vcombine.low %v507, %v514
        %v537 = vunpack.c.l.s4 1983009808
        %v538 = vunpack.c.0.s8 %v537
        %v539 = vlaneseq
        %v540 = vshrl.u32 %v539, 7
        %v541 = vsub.s32 %v538, %v540
        %v542 = vrot.slane %v535, %v541
        %v543 = vcombine.low %v517, %v518
        %v545 = vunpack.c.l.s4 1983009808
        %v546 = vunpack.c.0.s8 %v545
        %v547 = vlaneseq
        %v548 = vshrl.u32 %v547, 7
        %v549 = vsub.s32 %v546, %v548
        %v550 = vrot.slane %v543, %v549
        %v551 = vcombine.low %v526, %v534
        %v552 = vcombine.high %v526, %v534
        %v554 = vunpack.c.l.s4 1934713408
        %v555 = vunpack.c.0.s8 %v554
        %v556 = vlaneseq
        %v557 = vshrl.u32 %v556, 7
        %v558 = vsub.s32 %v555, %v557
        %v559 = vrot.slane %v551, %v558
        %v561 = vunpack.c.l.s4 1934713408
        %v562 = vunpack.c.0.s8 %v561
        %v563 = vlaneseq
        %v564 = vshrl.u32 %v563, 7
        %v565 = vsub.s32 %v562, %v564
        %v566 = vrot.slane %v552, %v565
        %v567 = vcombine.low %v542, %v550
        %v568 = vcombine.high %v542, %v550
        %v570 = vunpack.c.l.s4 1934713408
        %v571 = vunpack.c.0.s8 %v570
        %v572 = vlaneseq
        %v573 = vshrl.u32 %v572, 7
        %v574 = vsub.s32 %v571, %v573
        %v575 = vrot.slane %v567, %v574
        %v577 = vunpack.c.l.s4 1934713408
        %v578 = vunpack.c.0.s8 %v577
        %v579 = vlaneseq
        %v580 = vshrl.u32 %v579, 7
        %v581 = vsub.s32 %v578, %v580
        %v582 = vrot.slane %v568, %v581
        %v583 = vcombine.low %v559, %v575
        %v584 = vcombine.high %v559, %v575
        %v585 = vcombine.low %v566, %v582
        %v586 = vcombine.high %v566, %v582
        %v587 = vpack.c.bf16 %v583, %v583
        %v588 = vpack.c.bf16 %v584, %v584
        %v589 = vpack.c.bf16 %v585, %v585
        %v590 = vpack.c.bf16 %v586, %v586
        %vm591 = vcmask 60416
        %592 = vst.msk [vmem:[%s327] sm:$0xf] %vm591, %v587
        %593 = vst.msk [vmem:[%s327 + $0x4] sm:$0xf] %vm591, %v588
        %594 = vst.msk [vmem:[%s327 + $0x8] sm:$0xf] %vm591, %v589
        %595 = vst.msk [vmem:[%s327 + $0xc] sm:$0xf] %vm591, %v590
        %597 = vrot.lane.b32.xlu0 %v435, 120
        %v598 = vpop.permute.xlu0 %597
        %599 = vrot.lane.b32.xlu0 %v435, 112
        %v600 = vpop.permute.xlu0 %599
        %601 = vrot.lane.b32.xlu0 %v435, 104
        %v602 = vpop.permute.xlu0 %601
        %603 = vrot.lane.b32.xlu0 %v435, 96
        %v604 = vpop.permute.xlu0 %603
        %605 = vrot.lane.b32.xlu0 %v598, 96
        %v606 = vpop.permute.xlu0 %605
        %607 = vrot.lane.b32.xlu0 %v600, 96
        %v608 = vpop.permute.xlu0 %607
        %609 = vrot.lane.b32.xlu0 %v602, 96
        %v610 = vpop.permute.xlu0 %609
        %v615 = vcombine.low %v604, %v608
        %v616 = vcombine.high %v604, %v608
        %v618 = vunpack.c.l.s4 1983009808
        %v619 = vunpack.c.0.s8 %v618
        %v620 = vlaneseq
        %v621 = vshrl.u32 %v620, 7
        %v622 = vsub.s32 %v619, %v621
        %v623 = vrot.slane %v615, %v622
        %v625 = vunpack.c.l.s4 1983009808
        %v626 = vunpack.c.0.s8 %v625
        %v627 = vlaneseq
        %v628 = vshrl.u32 %v627, 7
        %v629 = vsub.s32 %v626, %v628
        %v630 = vrot.slane %v616, %v629
        %v631 = vcombine.low %v606, %v610
        %v632 = vcombine.high %v606, %v610
        %v634 = vunpack.c.l.s4 1983009808
        %v635 = vunpack.c.0.s8 %v634
        %v636 = vlaneseq
        %v637 = vshrl.u32 %v636, 7
        %v638 = vsub.s32 %v635, %v637
        %v639 = vrot.slane %v631, %v638
        %v641 = vunpack.c.l.s4 1983009808
        %v642 = vunpack.c.0.s8 %v641
        %v643 = vlaneseq
        %v644 = vshrl.u32 %v643, 7
        %v645 = vsub.s32 %v642, %v644
        %v646 = vrot.slane %v632, %v645
        %v647 = vcombine.low %v623, %v639
        %v648 = vcombine.high %v623, %v639
        %v650 = vunpack.c.l.s4 1934713408
        %v651 = vunpack.c.0.s8 %v650
        %v652 = vlaneseq
        %v653 = vshrl.u32 %v652, 7
        %v654 = vsub.s32 %v651, %v653
        %v655 = vrot.slane %v647, %v654
        %v657 = vunpack.c.l.s4 1934713408
        %v658 = vunpack.c.0.s8 %v657
        %v659 = vlaneseq
        %v660 = vshrl.u32 %v659, 7
        %v661 = vsub.s32 %v658, %v660
        %v662 = vrot.slane %v648, %v661
        %v663 = vcombine.low %v630, %v646
        %v664 = vcombine.high %v630, %v646
        %v666 = vunpack.c.l.s4 1934713408
        %v667 = vunpack.c.0.s8 %v666
        %v668 = vlaneseq
        %v669 = vshrl.u32 %v668, 7
        %v670 = vsub.s32 %v667, %v669
        %v671 = vrot.slane %v663, %v670
        %v673 = vunpack.c.l.s4 1934713408
        %v674 = vunpack.c.0.s8 %v673
        %v675 = vlaneseq
        %v676 = vshrl.u32 %v675, 7
        %v677 = vsub.s32 %v674, %v676
        %v678 = vrot.slane %v664, %v677
        %v679 = vcombine.high %v655, 0.0
        %v680 = vcombine.high %v662, 0.0
        %v681 = vcombine.high %v671, 0.0
        %v682 = vcombine.high %v678, 0.0
        %v683 = vcombine.low %v655, %v662
        %v685 = vunpack.c.l.s4 1983009808
        %v686 = vunpack.c.0.s8 %v685
        %v687 = vlaneseq
        %v688 = vshrl.u32 %v687, 7
        %v689 = vsub.s32 %v686, %v688
        %v690 = vrot.slane %v683, %v689
        %v691 = vcombine.low %v679, %v680
        %v693 = vunpack.c.l.s4 1983009808
        %v694 = vunpack.c.0.s8 %v693
        %v695 = vlaneseq
        %v696 = vshrl.u32 %v695, 7
        %v697 = vsub.s32 %v694, %v696
        %v698 = vrot.slane %v691, %v697
        %v699 = vcombine.low %v671, %v678
        %v701 = vunpack.c.l.s4 1983009808
        %v702 = vunpack.c.0.s8 %v701
        %v703 = vlaneseq
        %v704 = vshrl.u32 %v703, 7
        %v705 = vsub.s32 %v702, %v704
        %v706 = vrot.slane %v699, %v705
        %v707 = vcombine.low %v681, %v682
        %v709 = vunpack.c.l.s4 1983009808
        %v710 = vunpack.c.0.s8 %v709
        %v711 = vlaneseq
        %v712 = vshrl.u32 %v711, 7
        %v713 = vsub.s32 %v710, %v712
        %v714 = vrot.slane %v707, %v713
        %v715 = vcombine.low %v690, %v698
        %v716 = vcombine.high %v690, %v698
        %v718 = vunpack.c.l.s4 1934713408
        %v719 = vunpack.c.0.s8 %v718
        %v720 = vlaneseq
        %v721 = vshrl.u32 %v720, 7
        %v722 = vsub.s32 %v719, %v721
        %v723 = vrot.slane %v715, %v722
        %v725 = vunpack.c.l.s4 1934713408
        %v726 = vunpack.c.0.s8 %v725
        %v727 = vlaneseq
        %v728 = vshrl.u32 %v727, 7
        %v729 = vsub.s32 %v726, %v728
        %v730 = vrot.slane %v716, %v729
        %v731 = vcombine.low %v706, %v714
        %v732 = vcombine.high %v706, %v714
        %v734 = vunpack.c.l.s4 1934713408
        %v735 = vunpack.c.0.s8 %v734
        %v736 = vlaneseq
        %v737 = vshrl.u32 %v736, 7
        %v738 = vsub.s32 %v735, %v737
        %v739 = vrot.slane %v731, %v738
        %v741 = vunpack.c.l.s4 1934713408
        %v742 = vunpack.c.0.s8 %v741
        %v743 = vlaneseq
        %v744 = vshrl.u32 %v743, 7
        %v745 = vsub.s32 %v742, %v744
        %v746 = vrot.slane %v732, %v745
        %v747 = vcombine.low %v723, %v739
        %v748 = vcombine.high %v723, %v739
        %v749 = vcombine.low %v730, %v746
        %v750 = vcombine.high %v730, %v746
        %v751 = vpack.c.bf16 %v747, %v747
        %v752 = vpack.c.bf16 %v748, %v748
        %v753 = vpack.c.bf16 %v749, %v749
        %v754 = vpack.c.bf16 %v750, %v750
        %755 = vst.msk [vmem:[%s333] sm:$0xf] %vm591, %v751
        %756 = vst.msk [vmem:[%s333 + $0x4] sm:$0xf] %vm591, %v752
        %757 = vst.msk [vmem:[%s333 + $0x8] sm:$0xf] %vm591, %v753
        %758 = vst.msk [vmem:[%s333 + $0xc] sm:$0xf] %vm591, %v754
        %759 = vrot.lane.b32.xlu0 %v435, 64
        %v760 = vpop.permute.xlu0 %759
        %761 = vrot.lane.b32.xlu0 %v598, 64
        %v762 = vpop.permute.xlu0 %761
        %763 = vrot.lane.b32.xlu0 %v600, 64
        %v764 = vpop.permute.xlu0 %763
        %765 = vrot.lane.b32.xlu0 %v602, 64
        %v766 = vpop.permute.xlu0 %765
        %v771 = vcombine.low %v760, %v764
        %v772 = vcombine.high %v760, %v764
        %v774 = vunpack.c.l.s4 1983009808
        %v775 = vunpack.c.0.s8 %v774
        %v776 = vlaneseq
        %v777 = vshrl.u32 %v776, 7
        %v778 = vsub.s32 %v775, %v777
        %v779 = vrot.slane %v771, %v778
        %v781 = vunpack.c.l.s4 1983009808
        %v782 = vunpack.c.0.s8 %v781
        %v783 = vlaneseq
        %v784 = vshrl.u32 %v783, 7
        %v785 = vsub.s32 %v782, %v784
        %v786 = vrot.slane %v772, %v785
        %v787 = vcombine.low %v762, %v766
        %v788 = vcombine.high %v762, %v766
        %v790 = vunpack.c.l.s4 1983009808
        %v791 = vunpack.c.0.s8 %v790
        %v792 = vlaneseq
        %v793 = vshrl.u32 %v792, 7
        %v794 = vsub.s32 %v791, %v793
        %v795 = vrot.slane %v787, %v794
        %v797 = vunpack.c.l.s4 1983009808
        %v798 = vunpack.c.0.s8 %v797
        %v799 = vlaneseq
        %v800 = vshrl.u32 %v799, 7
        %v801 = vsub.s32 %v798, %v800
        %v802 = vrot.slane %v788, %v801
        %v803 = vcombine.low %v779, %v795
        %v804 = vcombine.high %v779, %v795
        %v806 = vunpack.c.l.s4 1934713408
        %v807 = vunpack.c.0.s8 %v806
        %v808 = vlaneseq
        %v809 = vshrl.u32 %v808, 7
        %v810 = vsub.s32 %v807, %v809
        %v811 = vrot.slane %v803, %v810
        %v813 = vunpack.c.l.s4 1934713408
        %v814 = vunpack.c.0.s8 %v813
        %v815 = vlaneseq
        %v816 = vshrl.u32 %v815, 7
        %v817 = vsub.s32 %v814, %v816
        %v818 = vrot.slane %v804, %v817
        %v819 = vcombine.low %v786, %v802
        %v820 = vcombine.high %v786, %v802
        %v822 = vunpack.c.l.s4 1934713408
        %v823 = vunpack.c.0.s8 %v822
        %v824 = vlaneseq
        %v825 = vshrl.u32 %v824, 7
        %v826 = vsub.s32 %v823, %v825
        %v827 = vrot.slane %v819, %v826
        %v829 = vunpack.c.l.s4 1934713408
        %v830 = vunpack.c.0.s8 %v829
        %v831 = vlaneseq
        %v832 = vshrl.u32 %v831, 7
        %v833 = vsub.s32 %v830, %v832
        %v834 = vrot.slane %v820, %v833
        %v835 = vcombine.high %v811, 0.0
        %v836 = vcombine.high %v818, 0.0
        %v837 = vcombine.high %v827, 0.0
        %v838 = vcombine.high %v834, 0.0
        %v839 = vcombine.low %v811, %v818
        %v841 = vunpack.c.l.s4 1983009808
        %v842 = vunpack.c.0.s8 %v841
        %v843 = vlaneseq
        %v844 = vshrl.u32 %v843, 7
        %v845 = vsub.s32 %v842, %v844
        %v846 = vrot.slane %v839, %v845
        %v847 = vcombine.low %v835, %v836
        %v849 = vunpack.c.l.s4 1983009808
        %v850 = vunpack.c.0.s8 %v849
        %v851 = vlaneseq
        %v852 = vshrl.u32 %v851, 7
        %v853 = vsub.s32 %v850, %v852
        %v854 = vrot.slane %v847, %v853
        %v855 = vcombine.low %v827, %v834
        %v857 = vunpack.c.l.s4 1983009808
        %v858 = vunpack.c.0.s8 %v857
        %v859 = vlaneseq
        %v860 = vshrl.u32 %v859, 7
        %v861 = vsub.s32 %v858, %v860
        %v862 = vrot.slane %v855, %v861
        %v863 = vcombine.low %v837, %v838
        %v865 = vunpack.c.l.s4 1983009808
        %v866 = vunpack.c.0.s8 %v865
        %v867 = vlaneseq
        %v868 = vshrl.u32 %v867, 7
        %v869 = vsub.s32 %v866, %v868
        %v870 = vrot.slane %v863, %v869
        %v871 = vcombine.low %v846, %v854
        %v872 = vcombine.high %v846, %v854
        %v874 = vunpack.c.l.s4 1934713408
        %v875 = vunpack.c.0.s8 %v874
        %v876 = vlaneseq
        %v877 = vshrl.u32 %v876, 7
        %v878 = vsub.s32 %v875, %v877
        %v879 = vrot.slane %v871, %v878
        %v881 = vunpack.c.l.s4 1934713408
        %v882 = vunpack.c.0.s8 %v881
        %v883 = vlaneseq
        %v884 = vshrl.u32 %v883, 7
        %v885 = vsub.s32 %v882, %v884
        %v886 = vrot.slane %v872, %v885
        %v887 = vcombine.low %v862, %v870
        %v888 = vcombine.high %v862, %v870
        %v890 = vunpack.c.l.s4 1934713408
        %v891 = vunpack.c.0.s8 %v890
        %v892 = vlaneseq
        %v893 = vshrl.u32 %v892, 7
        %v894 = vsub.s32 %v891, %v893
        %v895 = vrot.slane %v887, %v894
        %v897 = vunpack.c.l.s4 1934713408
        %v898 = vunpack.c.0.s8 %v897
        %v899 = vlaneseq
        %v900 = vshrl.u32 %v899, 7
        %v901 = vsub.s32 %v898, %v900
        %v902 = vrot.slane %v888, %v901
        %v903 = vcombine.low %v879, %v895
        %v904 = vcombine.high %v879, %v895
        %v905 = vcombine.low %v886, %v902
        %v906 = vcombine.high %v886, %v902
        %v907 = vpack.c.bf16 %v903, %v903
        %v908 = vpack.c.bf16 %v904, %v904
        %v909 = vpack.c.bf16 %v905, %v905
        %v910 = vpack.c.bf16 %v906, %v906
        %911 = vst.msk [vmem:[%s339] sm:$0xf] %vm591, %v907
        %912 = vst.msk [vmem:[%s339 + $0x4] sm:$0xf] %vm591, %v908
        %913 = vst.msk [vmem:[%s339 + $0x8] sm:$0xf] %vm591, %v909
        %914 = vst.msk [vmem:[%s339 + $0xc] sm:$0xf] %vm591, %v910
        %s915 = sand.u32 %s157, 1
        %s916 = sand.u32 %s157, 1
        %s917 = smul.addr %s916, 16
        %s918 = scalar_lea.vmem [#allocation6], %s917
        %s919 = sand.u32 %s185, 1
        %s920 = sand.u32 %s185, 1
        %s921 = smul.addr %s920, 16
        %s922 = scalar_lea.vmem [#allocation7], %s921
        %s923 = sand.u32 %s213, 1
        %s924 = sand.u32 %s213, 1
        %s925 = smul.addr %s924, 16
        %s926 = scalar_lea.vmem [#allocation8], %s925
        // Predicated region
        $region49: #{tpu_custom_call.1} parent=39 // pred_check
          %p927 = pneg %p167
        $region50: #{tpu_custom_call.1} parent=39 // pred_check_branch
          %929 = sbr.rel (%p927) target = $region52
        $region51: #{tpu_custom_call.1} parent=39 // pred_region
          %s930 = smul.addr %s27, 8
          %s931 = sadd.s32 %s28, %s930
          %s932 = smul.addr %s931, 4
          %s933 = scalar_lea.vmem %s5, %s932
          // Predicated region
          $region53: #{tpu_custom_call.1} parent=51 // pred_check
            _
          $region54: #{tpu_custom_call.1} parent=51 // pred_check_branch
            %935 = sbr.rel (0) target = $region56
          $region55: #{tpu_custom_call.1} parent=51 // pred_region
            // Predicated region
            $region57: #{tpu_custom_call.1} parent=55 // pred_check
              _
            $region58: #{tpu_custom_call.1} parent=55 // pred_check_branch
              %937 = sbr.rel target = $region60
            $region59: #{tpu_custom_call.1} parent=55 // pred_region
              // Predicated region
              $region72: #{tpu_custom_call.1} parent=59 // pred_check
                _
              $region73: #{tpu_custom_call.1} parent=59 // pred_check_branch
                %958 = sbr.rel (0) target = $region75
              $region74: #{tpu_custom_call.1} parent=59 // pred_region
                loop: start=0, step=1, limit=1
                $region76: #{tpu_custom_call.1} parent=74 // loop_pre_header
                  _
                $region77: #{tpu_custom_call.1} parent=74 // loop_header
                  %s960 = sphi 0, %s964
                  %p961 = scmp.ge.s32.totalorder %s960, 1
                  %s965 = sphi %s918, %s918
                  %s966 = sphi %s933, %s933
                $region78: #{tpu_custom_call.1} parent=74 // loop_header_branch
                  %963 = sbr.rel (%p961) target = $region82
                $region79: #{tpu_custom_call.1} parent=74 // loop_body
                  _
                $region80: #{tpu_custom_call.1} parent=74 // loop_footer
                  %s964 = sadd.s32 1, %s960
                $region81: #{tpu_custom_call.1} parent=74 // loop_footer_branch
                  %959 = sbr.rel target = $region77
                $region82: #{tpu_custom_call.1} parent=74 // loop_exit
                  _
                loop: start=0, step=1, limit=1
                $region83: #{tpu_custom_call.1} parent=74 // loop_pre_header
                  _
                $region84: #{tpu_custom_call.1} parent=74 // loop_header
                  %s969 = sphi 0, %s973
                  %p970 = scmp.ge.s32.totalorder %s969, 1
                  %s974 = sphi %s918, %s918
                  %s975 = sphi %s933, %s933
                $region85: #{tpu_custom_call.1} parent=74 // loop_header_branch
                  %972 = sbr.rel (%p970) target = $region89
                $region86: #{tpu_custom_call.1} parent=74 // loop_body
                  %v976 = vld [vmem:[%s974] sm:$0xf]
                  %977 = vst [vmem:[%s975] sm:$0xf] %v976
                  %v978 = vld [vmem:[%s974 + $0x4] sm:$0xf]
                  %979 = vst [vmem:[%s975 + $0x8] sm:$0xf] %v978
                  %v980 = vld [vmem:[%s974 + $0x8] sm:$0xf]
                  %981 = vst [vmem:[%s975 + $0x10] sm:$0xf] %v980
                  %v982 = vld [vmem:[%s974 + $0xc] sm:$0xf]
                  %983 = vst [vmem:[%s975 + $0x18] sm:$0xf] %v982
                $region87: #{tpu_custom_call.1} parent=74 // loop_footer
                  %s973 = sadd.s32 1, %s969
                $region88: #{tpu_custom_call.1} parent=74 // loop_footer_branch
                  %968 = sbr.rel target = $region84
                $region89: #{tpu_custom_call.1} parent=74 // loop_exit
                  _
              $region75: #{tpu_custom_call.1} parent=59 // pred_fallthru
                _
            $region60: #{tpu_custom_call.1} parent=55 // pred_fallthru
              _
            // Predicated region
            $region61: #{tpu_custom_call.1} parent=55 // pred_check
              _
            $region62: #{tpu_custom_call.1} parent=55 // pred_check_branch
              %939 = sbr.rel (0) target = $region64
            $region63: #{tpu_custom_call.1} parent=55 // pred_region
              loop: start=0, step=1, limit=1
              $region65: #{tpu_custom_call.1} parent=63 // loop_pre_header
                _
              $region66: #{tpu_custom_call.1} parent=63 // loop_header
                %s942 = sphi 0, %s946
                %p943 = scmp.ge.s32.totalorder %s942, 1
                %s947 = sphi %s918, %s918
                %s948 = sphi %s933, %s933
              $region67: #{tpu_custom_call.1} parent=63 // loop_header_branch
                %945 = sbr.rel (%p943) target = $region71
              $region68: #{tpu_custom_call.1} parent=63 // loop_body
                %v949 = vld [vmem:[%s947] sm:$0xf]
                %950 = vst [vmem:[%s948] sm:$0xf] %v949
                %v951 = vld [vmem:[%s947 + $0x4] sm:$0xf]
                %952 = vst [vmem:[%s948 + $0x8] sm:$0xf] %v951
                %v953 = vld [vmem:[%s947 + $0x8] sm:$0xf]
                %954 = vst [vmem:[%s948 + $0x10] sm:$0xf] %v953
                %v955 = vld [vmem:[%s947 + $0xc] sm:$0xf]
                %956 = vst [vmem:[%s948 + $0x18] sm:$0xf] %v955
              $region69: #{tpu_custom_call.1} parent=63 // loop_footer
                %s946 = sadd.s32 1, %s942
              $region70: #{tpu_custom_call.1} parent=63 // loop_footer_branch
                %941 = sbr.rel target = $region66
              $region71: #{tpu_custom_call.1} parent=63 // loop_exit
                _
            $region64: #{tpu_custom_call.1} parent=55 // pred_fallthru
              _
          $region56: #{tpu_custom_call.1} parent=51 // pred_fallthru
            _
          %984 = vnop
        $region52: #{tpu_custom_call.1} parent=39 // pred_fallthru
          _
        // Predicated region
        $region90: #{tpu_custom_call.1} parent=39 // pred_check
          %p985 = pneg %p195
        $region91: #{tpu_custom_call.1} parent=39 // pred_check_branch
          %987 = sbr.rel (%p985) target = $region93
        $region92: #{tpu_custom_call.1} parent=39 // pred_region
          %s988 = smul.addr %s27, 8
          %s989 = sadd.s32 %s28, %s988
          %s990 = smul.addr %s989, 4
          %s991 = scalar_lea.vmem %s6, %s990
          // Predicated region
          $region94: #{tpu_custom_call.1} parent=92 // pred_check
            _
          $region95: #{tpu_custom_call.1} parent=92 // pred_check_branch
            %993 = sbr.rel (0) target = $region97
          $region96: #{tpu_custom_call.1} parent=92 // pred_region
            // Predicated region
            $region98: #{tpu_custom_call.1} parent=96 // pred_check
              _
            $region99: #{tpu_custom_call.1} parent=96 // pred_check_branch
              %995 = sbr.rel target = $region101
            $region100: #{tpu_custom_call.1} parent=96 // pred_region
              // Predicated region
              $region113: #{tpu_custom_call.1} parent=100 // pred_check
                _
              $region114: #{tpu_custom_call.1} parent=100 // pred_check_branch
                %1016 = sbr.rel (0) target = $region116
              $region115: #{tpu_custom_call.1} parent=100 // pred_region
                loop: start=0, step=1, limit=1
                $region117: #{tpu_custom_call.1} parent=115 // loop_pre_header
                  _
                $region118: #{tpu_custom_call.1} parent=115 // loop_header
                  %s1018 = sphi 0, %s1022
                  %p1019 = scmp.ge.s32.totalorder %s1018, 1
                  %s1023 = sphi %s922, %s922
                  %s1024 = sphi %s991, %s991
                $region119: #{tpu_custom_call.1} parent=115 // loop_header_branch
                  %1021 = sbr.rel (%p1019) target = $region123
                $region120: #{tpu_custom_call.1} parent=115 // loop_body
                  _
                $region121: #{tpu_custom_call.1} parent=115 // loop_footer
                  %s1022 = sadd.s32 1, %s1018
                $region122: #{tpu_custom_call.1} parent=115 // loop_footer_branch
                  %1017 = sbr.rel target = $region118
                $region123: #{tpu_custom_call.1} parent=115 // loop_exit
                  _
                loop: start=0, step=1, limit=1
                $region124: #{tpu_custom_call.1} parent=115 // loop_pre_header
                  _
                $region125: #{tpu_custom_call.1} parent=115 // loop_header
                  %s1027 = sphi 0, %s1031
                  %p1028 = scmp.ge.s32.totalorder %s1027, 1
                  %s1032 = sphi %s922, %s922
                  %s1033 = sphi %s991, %s991
                $region126: #{tpu_custom_call.1} parent=115 // loop_header_branch
                  %1030 = sbr.rel (%p1028) target = $region130
                $region127: #{tpu_custom_call.1} parent=115 // loop_body
                  %v1034 = vld [vmem:[%s1032] sm:$0xf]
                  %1035 = vst [vmem:[%s1033] sm:$0xf] %v1034
                  %v1036 = vld [vmem:[%s1032 + $0x4] sm:$0xf]
                  %1037 = vst [vmem:[%s1033 + $0x8] sm:$0xf] %v1036
                  %v1038 = vld [vmem:[%s1032 + $0x8] sm:$0xf]
                  %1039 = vst [vmem:[%s1033 + $0x10] sm:$0xf] %v1038
                  %v1040 = vld [vmem:[%s1032 + $0xc] sm:$0xf]
                  %1041 = vst [vmem:[%s1033 + $0x18] sm:$0xf] %v1040
                $region128: #{tpu_custom_call.1} parent=115 // loop_footer
                  %s1031 = sadd.s32 1, %s1027
                $region129: #{tpu_custom_call.1} parent=115 // loop_footer_branch
                  %1026 = sbr.rel target = $region125
                $region130: #{tpu_custom_call.1} parent=115 // loop_exit
                  _
              $region116: #{tpu_custom_call.1} parent=100 // pred_fallthru
                _
            $region101: #{tpu_custom_call.1} parent=96 // pred_fallthru
              _
            // Predicated region
            $region102: #{tpu_custom_call.1} parent=96 // pred_check
              _
            $region103: #{tpu_custom_call.1} parent=96 // pred_check_branch
              %997 = sbr.rel (0) target = $region105
            $region104: #{tpu_custom_call.1} parent=96 // pred_region
              loop: start=0, step=1, limit=1
              $region106: #{tpu_custom_call.1} parent=104 // loop_pre_header
                _
              $region107: #{tpu_custom_call.1} parent=104 // loop_header
                %s1000 = sphi 0, %s1004
                %p1001 = scmp.ge.s32.totalorder %s1000, 1
                %s1005 = sphi %s922, %s922
                %s1006 = sphi %s991, %s991
              $region108: #{tpu_custom_call.1} parent=104 // loop_header_branch
                %1003 = sbr.rel (%p1001) target = $region112
              $region109: #{tpu_custom_call.1} parent=104 // loop_body
                %v1007 = vld [vmem:[%s1005] sm:$0xf]
                %1008 = vst [vmem:[%s1006] sm:$0xf] %v1007
                %v1009 = vld [vmem:[%s1005 + $0x4] sm:$0xf]
                %1010 = vst [vmem:[%s1006 + $0x8] sm:$0xf] %v1009
                %v1011 = vld [vmem:[%s1005 + $0x8] sm:$0xf]
                %1012 = vst [vmem:[%s1006 + $0x10] sm:$0xf] %v1011
                %v1013 = vld [vmem:[%s1005 + $0xc] sm:$0xf]
                %1014 = vst [vmem:[%s1006 + $0x18] sm:$0xf] %v1013
              $region110: #{tpu_custom_call.1} parent=104 // loop_footer
                %s1004 = sadd.s32 1, %s1000
              $region111: #{tpu_custom_call.1} parent=104 // loop_footer_branch
                %999 = sbr.rel target = $region107
              $region112: #{tpu_custom_call.1} parent=104 // loop_exit
                _
            $region105: #{tpu_custom_call.1} parent=96 // pred_fallthru
              _
          $region97: #{tpu_custom_call.1} parent=92 // pred_fallthru
            _
          %1042 = vnop
        $region93: #{tpu_custom_call.1} parent=39 // pred_fallthru
          _
        // Predicated region
        $region131: #{tpu_custom_call.1} parent=39 // pred_check
          %p1043 = pneg %p223
        $region132: #{tpu_custom_call.1} parent=39 // pred_check_branch
          %1045 = sbr.rel (%p1043) target = $region134
        $region133: #{tpu_custom_call.1} parent=39 // pred_region
          %s1046 = smul.addr %s27, 8
          %s1047 = sadd.s32 %s28, %s1046
          %s1048 = smul.addr %s1047, 4
          %s1049 = scalar_lea.vmem %s7, %s1048
          // Predicated region
          $region135: #{tpu_custom_call.1} parent=133 // pred_check
            _
          $region136: #{tpu_custom_call.1} parent=133 // pred_check_branch
            %1051 = sbr.rel (0) target = $region138
          $region137: #{tpu_custom_call.1} parent=133 // pred_region
            // Predicated region
            $region139: #{tpu_custom_call.1} parent=137 // pred_check
              _
            $region140: #{tpu_custom_call.1} parent=137 // pred_check_branch
              %1053 = sbr.rel target = $region142
            $region141: #{tpu_custom_call.1} parent=137 // pred_region
              // Predicated region
              $region154: #{tpu_custom_call.1} parent=141 // pred_check
                _
              $region155: #{tpu_custom_call.1} parent=141 // pred_check_branch
                %1074 = sbr.rel (0) target = $region157
              $region156: #{tpu_custom_call.1} parent=141 // pred_region
                loop: start=0, step=1, limit=1
                $region158: #{tpu_custom_call.1} parent=156 // loop_pre_header
                  _
                $region159: #{tpu_custom_call.1} parent=156 // loop_header
                  %s1076 = sphi 0, %s1080
                  %p1077 = scmp.ge.s32.totalorder %s1076, 1
                  %s1081 = sphi %s926, %s926
                  %s1082 = sphi %s1049, %s1049
                $region160: #{tpu_custom_call.1} parent=156 // loop_header_branch
                  %1079 = sbr.rel (%p1077) target = $region164
                $region161: #{tpu_custom_call.1} parent=156 // loop_body
                  _
                $region162: #{tpu_custom_call.1} parent=156 // loop_footer
                  %s1080 = sadd.s32 1, %s1076
                $region163: #{tpu_custom_call.1} parent=156 // loop_footer_branch
                  %1075 = sbr.rel target = $region159
                $region164: #{tpu_custom_call.1} parent=156 // loop_exit
                  _
                loop: start=0, step=1, limit=1
                $region165: #{tpu_custom_call.1} parent=156 // loop_pre_header
                  _
                $region166: #{tpu_custom_call.1} parent=156 // loop_header
                  %s1085 = sphi 0, %s1089
                  %p1086 = scmp.ge.s32.totalorder %s1085, 1
                  %s1090 = sphi %s926, %s926
                  %s1091 = sphi %s1049, %s1049
                $region167: #{tpu_custom_call.1} parent=156 // loop_header_branch
                  %1088 = sbr.rel (%p1086) target = $region171
                $region168: #{tpu_custom_call.1} parent=156 // loop_body
                  %v1092 = vld [vmem:[%s1090] sm:$0xf]
                  %1093 = vst [vmem:[%s1091] sm:$0xf] %v1092
                  %v1094 = vld [vmem:[%s1090 + $0x4] sm:$0xf]
                  %1095 = vst [vmem:[%s1091 + $0x8] sm:$0xf] %v1094
                  %v1096 = vld [vmem:[%s1090 + $0x8] sm:$0xf]
                  %1097 = vst [vmem:[%s1091 + $0x10] sm:$0xf] %v1096
                  %v1098 = vld [vmem:[%s1090 + $0xc] sm:$0xf]
                  %1099 = vst [vmem:[%s1091 + $0x18] sm:$0xf] %v1098
                $region169: #{tpu_custom_call.1} parent=156 // loop_footer
                  %s1089 = sadd.s32 1, %s1085
                $region170: #{tpu_custom_call.1} parent=156 // loop_footer_branch
                  %1084 = sbr.rel target = $region166
                $region171: #{tpu_custom_call.1} parent=156 // loop_exit
                  _
              $region157: #{tpu_custom_call.1} parent=141 // pred_fallthru
                _
            $region142: #{tpu_custom_call.1} parent=137 // pred_fallthru
              _
            // Predicated region
            $region143: #{tpu_custom_call.1} parent=137 // pred_check
              _
            $region144: #{tpu_custom_call.1} parent=137 // pred_check_branch
              %1055 = sbr.rel (0) target = $region146
            $region145: #{tpu_custom_call.1} parent=137 // pred_region
              loop: start=0, step=1, limit=1
              $region147: #{tpu_custom_call.1} parent=145 // loop_pre_header
                _
              $region148: #{tpu_custom_call.1} parent=145 // loop_header
                %s1058 = sphi 0, %s1062
                %p1059 = scmp.ge.s32.totalorder %s1058, 1
                %s1063 = sphi %s926, %s926
                %s1064 = sphi %s1049, %s1049
              $region149: #{tpu_custom_call.1} parent=145 // loop_header_branch
                %1061 = sbr.rel (%p1059) target = $region153
              $region150: #{tpu_custom_call.1} parent=145 // loop_body
                %v1065 = vld [vmem:[%s1063] sm:$0xf]
                %1066 = vst [vmem:[%s1064] sm:$0xf] %v1065
                %v1067 = vld [vmem:[%s1063 + $0x4] sm:$0xf]
                %1068 = vst [vmem:[%s1064 + $0x8] sm:$0xf] %v1067
                %v1069 = vld [vmem:[%s1063 + $0x8] sm:$0xf]
                %1070 = vst [vmem:[%s1064 + $0x10] sm:$0xf] %v1069
                %v1071 = vld [vmem:[%s1063 + $0xc] sm:$0xf]
                %1072 = vst [vmem:[%s1064 + $0x18] sm:$0xf] %v1071
              $region151: #{tpu_custom_call.1} parent=145 // loop_footer
                %s1062 = sadd.s32 1, %s1058
              $region152: #{tpu_custom_call.1} parent=145 // loop_footer_branch
                %1057 = sbr.rel target = $region148
              $region153: #{tpu_custom_call.1} parent=145 // loop_exit
                _
            $region146: #{tpu_custom_call.1} parent=137 // pred_fallthru
              _
          $region138: #{tpu_custom_call.1} parent=133 // pred_fallthru
            _
          %1100 = vnop
        $region134: #{tpu_custom_call.1} parent=39 // pred_fallthru
          _
      $region40: #{tpu_custom_call.1} parent=5 // pred_fallthru
        _
      %p1101 = scmp.le.s32.totalorder 2, %s18
      // Predicated region
      $region172: #{tpu_custom_call.1} parent=5 // pred_check
        %p1102 = pneg %p1101
      $region173: #{tpu_custom_call.1} parent=5 // pred_check_branch
        %1104 = sbr.rel (%p1102) target = $region175
      $region174: #{tpu_custom_call.1} parent=5 // pred_region
        %s1105 = ssub.s32 %s18, 2
        // Predicated region
        $region176: #{tpu_custom_call.1} parent=174 // pred_check
          %p1106 = pneg %p173
        $region177: #{tpu_custom_call.1} parent=174 // pred_check_branch
          %1108 = sbr.rel (%p1106) target = $region179
        $region178: #{tpu_custom_call.1} parent=174 // pred_region
          %s1109 = sand.u32 %s158, 1
          %s1110 = sand.u32 %s158, 1
          %s1111 = smul.addr %s1110, 16
          %s1112 = scalar_lea.vmem [#allocation6], %s1111
        $region179: #{tpu_custom_call.1} parent=174 // pred_fallthru
          _
        // Predicated region
        $region180: #{tpu_custom_call.1} parent=174 // pred_check
          %p1113 = pneg %p201
        $region181: #{tpu_custom_call.1} parent=174 // pred_check_branch
          %1115 = sbr.rel (%p1113) target = $region183
        $region182: #{tpu_custom_call.1} parent=174 // pred_region
          %s1116 = sand.u32 %s186, 1
          %s1117 = sand.u32 %s186, 1
          %s1118 = smul.addr %s1117, 16
          %s1119 = scalar_lea.vmem [#allocation7], %s1118
        $region183: #{tpu_custom_call.1} parent=174 // pred_fallthru
          _
        // Predicated region
        $region184: #{tpu_custom_call.1} parent=174 // pred_check
          %p1120 = pneg %p229
        $region185: #{tpu_custom_call.1} parent=174 // pred_check_branch
          %1122 = sbr.rel (%p1120) target = $region187
        $region186: #{tpu_custom_call.1} parent=174 // pred_region
          %s1123 = sand.u32 %s214, 1
          %s1124 = sand.u32 %s214, 1
          %s1125 = smul.addr %s1124, 16
          %s1126 = scalar_lea.vmem [#allocation8], %s1125
        $region187: #{tpu_custom_call.1} parent=174 // pred_fallthru
          _
      $region175: #{tpu_custom_call.1} parent=5 // pred_fallthru
        _
    $region6: #{tpu_custom_call.1} parent=1 // loop_footer
      %s22 = sadd.s32 1, %s18
    $region7: #{tpu_custom_call.1} parent=1 // loop_footer_branch
      %17 = sbr.rel target = $region3
    $region8: #{tpu_custom_call.1} parent=1 // loop_exit
      _
    %1127 = vsyncpa [#allocation3], 1
    %s1128 = scalar_lea.sflag [#allocation3], 1
    %1129 = vsyncpa %s1128, 1
    %1130 = vsyncpa [#allocation5], 1

</llo_original>
